<compile_context>
chip_gen: v7x
topology: tpu7x:2x2x1
jax: 0.10.0
libtpu: 0.0.40
codegen_flags: <defaults>
</compile_context>

<pallas_src>
import jax
import jax.numpy as jnp
from jax.experimental import pallas as pl
from jax.experimental.pallas import tpu as pltpu

IN_FEATURES = 10
OUT_FEATURES = 1


def _round_up(x, m):
    return ((x + m - 1) // m) * m


def linear_kernel(x_ref, w_ref, b_ref, o_ref):
    # x_ref: (10, TB) VMEM  (features on sublanes, batch on lanes)
    # w_ref: (10,)    SMEM  (scalar weights)
    # b_ref: (1,)     SMEM  (scalar bias)
    # o_ref: (1, TB)  VMEM
    tb = x_ref.shape[1]
    x = x_ref[...]                                      # dense (10, TB) f32 load
    acc = jnp.full((1, tb), b_ref[0], dtype=jnp.float32)
    # 10 VPU FMAs per output vreg; static Python loop -> fully unrolled.
    for k in range(IN_FEATURES):
        acc = acc + x[k:k + 1, :] * w_ref[k]            # SMEM scalar * vector
    o_ref[...] = acc.astype(o_ref.dtype)                # lane-dense unmasked store


def my_model_forward(x, weight, bias):
    """x: (B, 10) f32; weight: (1, 10) (PyTorch layout); bias: (1,). Returns (B, 1)."""
    B = x.shape[0]
    # Batch tile: multiple of 128 lanes, capped at 512 -> ~40 KiB double-buffered,
    # safe on v5e / v6e / v7x scoped-VMEM defaults.
    TB = min(512, _round_up(B, 128))
    B_pad = _round_up(B, TB)

    # Lane-dense layout: features on sublanes, (padded) batch on lanes.
    x_t = jnp.zeros((IN_FEATURES, B_pad), jnp.float32).at[:, :B].set(
        x.astype(jnp.float32).T)
    w = weight.reshape(IN_FEATURES).astype(jnp.float32)   # (10,) -> SMEM
    b = bias.reshape(OUT_FEATURES).astype(jnp.float32)    # (1,)  -> SMEM

    out_t = pl.pallas_call(
        linear_kernel,
        out_shape=jax.ShapeDtypeStruct((OUT_FEATURES, B_pad), x.dtype),
        grid_spec=pltpu.PrefetchScalarGridSpec(
            num_scalar_prefetch=0,
            grid=(B_pad // TB,),
            in_specs=[
                pl.BlockSpec((IN_FEATURES, TB), lambda i: (0, i)),
                pl.BlockSpec(memory_space=pltpu.MemorySpace.SMEM),   # weight (10,)
                pl.BlockSpec(memory_space=pltpu.MemorySpace.SMEM),   # bias   (1,)
            ],
            out_specs=pl.BlockSpec((OUT_FEATURES, TB), lambda i: (0, i)),
        ),
        compiler_params=pltpu.CompilerParams(
            dimension_semantics=("parallel",)),
        cost_estimate=pl.CostEstimate(
            flops=2 * B * IN_FEATURES,
            transcendentals=0,
            bytes_accessed=4 * (B * (IN_FEATURES + OUT_FEATURES)
                                + IN_FEATURES + OUT_FEATURES),
        ),
    )(x_t, w, b)

    # Back to the PyTorch output layout (B, 1); padded lanes are dropped.
    return out_t[0, :B].reshape(B, OUT_FEATURES)


if __name__ == "__main__":
    key = jax.random.PRNGKey(0)
    kx, kw, kb = jax.random.split(key, 3)

    batch = 8
    x = jax.random.normal(kx, (batch, IN_FEATURES), dtype=jnp.float32)

    # Deterministic parameter init mimicking nn.Linear's uniform(-1/sqrt(fan_in), ...)
    bound = 1.0 / jnp.sqrt(jnp.float32(IN_FEATURES))
    weight = jax.random.uniform(kw, (OUT_FEATURES, IN_FEATURES),
                                minval=-bound, maxval=bound, dtype=jnp.float32)
    bias = jax.random.uniform(kb, (OUT_FEATURES,),
                              minval=-bound, maxval=bound, dtype=jnp.float32)

    out = my_model_forward(x, weight, bias)
    out = jax.block_until_ready(out)

    # Sanity check against plain JAX reference (same math as PyTorch x @ W.T + b).
    ref = x @ weight.T + bias
    assert out.shape == (batch, OUT_FEATURES)
    assert jnp.allclose(out, ref, atol=1e-5, rtol=1e-5)

    print("KERNEL_OK")
</pallas_src>

<mosaic_0001>
module attributes {stable_mosaic.version = 11 : i64} {
  func.func @linear_kernel(%arg0: i32, %arg1: memref<10x128xf32, #tpu.memory_space<vmem>>, %arg2: memref<10xf32, #tpu.memory_space<smem>>, %arg3: memref<1xf32, #tpu.memory_space<smem>>, %arg4: memref<1x128xf32, #tpu.memory_space<vmem>>) attributes {dimension_semantics = [#tpu.dimension_semantics<parallel>], iteration_bounds = array<i64: 1>, scalar_prefetch = 0 : i64, scratch_operands = 0 : i64, tpu.core_type = #tpu.core_type<tc>, window_params = [{transform_indices = @transform_0, window_bounds = array<i64: 10, 128>}, {transform_indices = @transform_1, window_bounds = array<i64: 10>}, {transform_indices = @transform_2, window_bounds = array<i64: 1>}, {transform_indices = @transform_3, window_bounds = array<i64: 1, 128>}]} {
    %c0 = arith.constant 0 : index
    %c0_0 = arith.constant 0 : index
    %0 = vector.load %arg1[%c0, %c0_0] : memref<10x128xf32, #tpu.memory_space<vmem>>, vector<10x128xf32>
    %c0_1 = arith.constant 0 : index
    %1 = memref.load %arg3[%c0_1] : memref<1xf32, #tpu.memory_space<smem>>
    %2 = vector.broadcast %1 : f32 to vector<1x128xf32>
    %3 = vector.extract_strided_slice %0 {offsets = [0, 0], sizes = [1, 128], strides = [1, 1]} : vector<10x128xf32> to vector<1x128xf32>
    %c0_2 = arith.constant 0 : index
    %4 = memref.load %arg2[%c0_2] : memref<10xf32, #tpu.memory_space<smem>>
    %5 = vector.broadcast %4 : f32 to vector<1x128xf32>
    %6 = arith.mulf %3, %5 : vector<1x128xf32>
    %7 = arith.addf %2, %6 : vector<1x128xf32>
    %8 = vector.extract_strided_slice %0 {offsets = [1, 0], sizes = [1, 128], strides = [1, 1]} : vector<10x128xf32> to vector<1x128xf32>
    %c1 = arith.constant 1 : index
    %9 = memref.load %arg2[%c1] : memref<10xf32, #tpu.memory_space<smem>>
    %10 = vector.broadcast %9 : f32 to vector<1x128xf32>
    %11 = arith.mulf %8, %10 : vector<1x128xf32>
    %12 = arith.addf %7, %11 : vector<1x128xf32>
    %13 = vector.extract_strided_slice %0 {offsets = [2, 0], sizes = [1, 128], strides = [1, 1]} : vector<10x128xf32> to vector<1x128xf32>
    %c2 = arith.constant 2 : index
    %14 = memref.load %arg2[%c2] : memref<10xf32, #tpu.memory_space<smem>>
    %15 = vector.broadcast %14 : f32 to vector<1x128xf32>
    %16 = arith.mulf %13, %15 : vector<1x128xf32>
    %17 = arith.addf %12, %16 : vector<1x128xf32>
    %18 = vector.extract_strided_slice %0 {offsets = [3, 0], sizes = [1, 128], strides = [1, 1]} : vector<10x128xf32> to vector<1x128xf32>
    %c3 = arith.constant 3 : index
    %19 = memref.load %arg2[%c3] : memref<10xf32, #tpu.memory_space<smem>>
    %20 = vector.broadcast %19 : f32 to vector<1x128xf32>
    %21 = arith.mulf %18, %20 : vector<1x128xf32>
    %22 = arith.addf %17, %21 : vector<1x128xf32>
    %23 = vector.extract_strided_slice %0 {offsets = [4, 0], sizes = [1, 128], strides = [1, 1]} : vector<10x128xf32> to vector<1x128xf32>
    %c4 = arith.constant 4 : index
    %24 = memref.load %arg2[%c4] : memref<10xf32, #tpu.memory_space<smem>>
    %25 = vector.broadcast %24 : f32 to vector<1x128xf32>
    %26 = arith.mulf %23, %25 : vector<1x128xf32>
    %27 = arith.addf %22, %26 : vector<1x128xf32>
    %28 = vector.extract_strided_slice %0 {offsets = [5, 0], sizes = [1, 128], strides = [1, 1]} : vector<10x128xf32> to vector<1x128xf32>
    %c5 = arith.constant 5 : index
    %29 = memref.load %arg2[%c5] : memref<10xf32, #tpu.memory_space<smem>>
    %30 = vector.broadcast %29 : f32 to vector<1x128xf32>
    %31 = arith.mulf %28, %30 : vector<1x128xf32>
    %32 = arith.addf %27, %31 : vector<1x128xf32>
    %33 = vector.extract_strided_slice %0 {offsets = [6, 0], sizes = [1, 128], strides = [1, 1]} : vector<10x128xf32> to vector<1x128xf32>
    %c6 = arith.constant 6 : index
    %34 = memref.load %arg2[%c6] : memref<10xf32, #tpu.memory_space<smem>>
    %35 = vector.broadcast %34 : f32 to vector<1x128xf32>
    %36 = arith.mulf %33, %35 : vector<1x128xf32>
    %37 = arith.addf %32, %36 : vector<1x128xf32>
    %38 = vector.extract_strided_slice %0 {offsets = [7, 0], sizes = [1, 128], strides = [1, 1]} : vector<10x128xf32> to vector<1x128xf32>
    %c7 = arith.constant 7 : index
    %39 = memref.load %arg2[%c7] : memref<10xf32, #tpu.memory_space<smem>>
    %40 = vector.broadcast %39 : f32 to vector<1x128xf32>
    %41 = arith.mulf %38, %40 : vector<1x128xf32>
    %42 = arith.addf %37, %41 : vector<1x128xf32>
    %43 = vector.extract_strided_slice %0 {offsets = [8, 0], sizes = [1, 128], strides = [1, 1]} : vector<10x128xf32> to vector<1x128xf32>
    %c8 = arith.constant 8 : index
    %44 = memref.load %arg2[%c8] : memref<10xf32, #tpu.memory_space<smem>>
    %45 = vector.broadcast %44 : f32 to vector<1x128xf32>
    %46 = arith.mulf %43, %45 : vector<1x128xf32>
    %47 = arith.addf %42, %46 : vector<1x128xf32>
    %48 = vector.extract_strided_slice %0 {offsets = [9, 0], sizes = [1, 128], strides = [1, 1]} : vector<10x128xf32> to vector<1x128xf32>
    %c9 = arith.constant 9 : index
    %49 = memref.load %arg2[%c9] : memref<10xf32, #tpu.memory_space<smem>>
    %50 = vector.broadcast %49 : f32 to vector<1x128xf32>
    %51 = arith.mulf %48, %50 : vector<1x128xf32>
    %52 = arith.addf %47, %51 : vector<1x128xf32>
    %c0_3 = arith.constant 0 : index
    %c0_4 = arith.constant 0 : index
    %53 = vector.load %arg4[%c0_3, %c0_4] : memref<1x128xf32, #tpu.memory_space<vmem>>, vector<1x128xf32>
    tpu.vector_store %arg4[%c0_3, %c0_4], %52 {strides = array<i32>} : memref<1x128xf32, #tpu.memory_space<vmem>>, vector<1x128xf32>,
    return
  }
  func.func @transform_0(%arg0: i32) -> (i32, i32) {
    %c0_i32 = arith.constant 0 : i32
    %c0_i32_0 = arith.constant 0 : i32
    return %c0_i32, %arg0 : i32, i32
  }
  func.func @transform_1(%arg0: i32) -> i32 {
    %c0_i32 = arith.constant 0 : i32
    %c0_i32_0 = arith.constant 0 : i32
    return %c0_i32 : i32
  }
  func.func @transform_2(%arg0: i32) -> i32 {
    %c0_i32 = arith.constant 0 : i32
    %c0_i32_0 = arith.constant 0 : i32
    return %c0_i32 : i32
  }
  func.func @transform_3(%arg0: i32) -> (i32, i32) {
    %c0_i32 = arith.constant 0 : i32
    %c0_i32_0 = arith.constant 0 : i32
    return %c0_i32, %arg0 : i32, i32
  }
}

</mosaic_0001>

<llo_original>
// kernel: tpu_custom_call.1
$region0: #{tpu_custom_call.1}
  #allocation0 [shape = 'u32[]', space=smem, size = 0x4, offset = 0x4, fixed_abs, tag = 'smem constant byte address 0x4 - core index']
  #allocation1 [shape = 'u32[144,128]{1,0:T(1,128)}', space=vmem, size = 0x12000, scoped, tag = 'internal scratch']
  #allocation2 [shape = 'f32[1]{0:T(128)S(6)}', space=smem, size = 0x200, scoped, tag = 'scoped memory for tpu_custom_call.1']
  %s0 = inlined_call_operand.hbm [shape: f32[10,128], index: 0, kind: input, shape index: {}]
  %s1 = inlined_call_operand.vmem [shape: f32[10], index: 1, kind: input, shape index: {}]
  %s2 = inlined_call_operand.<no memory space> [shape: f32[1], index: 2, kind: input, shape index: {}]
  %s3 = inlined_call_operand.hbm [shape: f32[1,128], index: 3, kind: output, shape index: {}]
  %s4 = sld [smem:[#allocation0]]
  $region30: #{tpu_custom_call.1} parent=0
    _
  %s6 = ssub.s32 1, %s4
  %s7 = scalar_select 0, %s6, %s4
  %8 = sst [smem:[#allocation2]] %s2
  $region1: #{tpu_custom_call.1} parent=0
    #allocation3 [shape = 'u8[8192]{0}', space=vmem, size = 0x2000, scoped, tag = 'input window, operand 0, single buffered']
    #allocation4 [shape = 's32[1]{0}', space=sflag, size = 0x4, scoped, tag = 'scoped memory for tpu_custom_call.1']
    #allocation5 [shape = 's32[1]{0}', space=sflag, size = 0x4, scoped, tag = 'scoped memory for tpu_custom_call.1']
    #allocation6 [shape = 's32[1]{0}', space=sflag, size = 0x4, scoped, tag = 'scoped memory for tpu_custom_call.1']
    #allocation7 [shape = 'u8[512]{0}', space=smem, size = 0x200, scoped, tag = 'input window, operand 1, single buffered']
    #allocation8 [shape = 'u8[512]{0}', space=vmem, size = 0x400, scoped, tag = 'output window, operand 0, single buffered']
    %9 = vsyncpa [#allocation4], 0
    %10 = vsyncpa [#allocation6], 0
    %11 = vsyncpa [#allocation5], 0
    // Predicated region
    $region2: #{tpu_custom_call.1} parent=1 // pred_check
      _
    $region3: #{tpu_custom_call.1} parent=1 // pred_check_branch
      %13 = sbr.rel (0) target = $region5
    $region4: #{tpu_custom_call.1} parent=1 // pred_region
      %s15 = ssub.s32 256, 256
      %16 = vsyncadd [#allocation4], %s15
      %s17 = sshll.u32 [#allocation3], 4
      %s18 = int_to_ptr.vmem [resolvable:$true] %s17
      %23 = dma.hbm_to_vmem [thread:$0]  %s0, 256, %s18, [#allocation4], 128, 128, 8
    $region5: #{tpu_custom_call.1} parent=1 // pred_fallthru
      _
    // Predicated region
    $region6: #{tpu_custom_call.1} parent=1 // pred_check
      _
    $region7: #{tpu_custom_call.1} parent=1 // pred_check_branch
      %25 = sbr.rel (0) target = $region9
    $region8: #{tpu_custom_call.1} parent=1 // pred_region
      %s27 = ssub.s32 16, 16
      %28 = vsyncadd [#allocation6], %s27
      %s30 = sshll.u32 %s1, 4
      %s31 = int_to_ptr.vmem [resolvable:$true] %s30
      %33 = dma.vmem_to_smem %s31, 16, [#allocation7], [#allocation6]
    $region9: #{tpu_custom_call.1} parent=1 // pred_fallthru
      _
    // Predicated region
    $region10: #{tpu_custom_call.1} parent=1 // pred_check
      _
    $region11: #{tpu_custom_call.1} parent=1 // pred_check_branch
      %35 = sbr.rel (0) target = $region13
    $region12: #{tpu_custom_call.1} parent=1 // pred_region
      _
    $region13: #{tpu_custom_call.1} parent=1 // pred_fallthru
      _
    // Predicated region
    $region14: #{tpu_custom_call.1} parent=1 // pred_check
      _
    $region15: #{tpu_custom_call.1} parent=1 // pred_check_branch
      %37 = sbr.rel (0) target = $region17
    $region16: #{tpu_custom_call.1} parent=1 // pred_region
      %38 = dma.done [#allocation4], 256
    $region17: #{tpu_custom_call.1} parent=1 // pred_fallthru
      _
    // Predicated region
    $region18: #{tpu_custom_call.1} parent=1 // pred_check
      _
    $region19: #{tpu_custom_call.1} parent=1 // pred_check_branch
      %40 = sbr.rel (0) target = $region21
    $region20: #{tpu_custom_call.1} parent=1 // pred_region
      %41 = dma.done [#allocation6], 16
    $region21: #{tpu_custom_call.1} parent=1 // pred_fallthru
      _
    %42 = sfence
    %v43 = vld [vmem:[#allocation3] sm:$0xff]
    %v44 = vld [vmem:[#allocation3 + $0x8] sm:$0x3]
    %s45 = sld [smem:[#allocation2]]
    %v46 = vstv %s45
    %s47 = sld [smem:[#allocation7]]
    %v48 = vstv %s47
    %v49 = vmul.f32 %v43, %v48
    %v50 = vadd.f32 %v46, %v49
    %s51 = sld [smem:[#allocation7 + $0x1]]
    %v52 = vstv %s51
    %v53 = vmul.f32 %v43, %v52
    %v55 = vrot.slane %v53, 1
    %v57 = vadd.f32 %v50, %v55
    %s58 = sld [smem:[#allocation7 + $0x2]]
    %v59 = vstv %s58
    %v60 = vmul.f32 %v43, %v59
    %v62 = vrot.slane %v60, 2
    %v64 = vadd.f32 %v57, %v62
    %s65 = sld [smem:[#allocation7 + $0x3]]
    %v66 = vstv %s65
    %v67 = vmul.f32 %v43, %v66
    %v69 = vrot.slane %v67, 3
    %v71 = vadd.f32 %v64, %v69
    %s72 = sld [smem:[#allocation7 + $0x4]]
    %v73 = vstv %s72
    %v74 = vmul.f32 %v43, %v73
    %v76 = vrot.slane %v74, 4
    %v78 = vadd.f32 %v71, %v76
    %s79 = sld [smem:[#allocation7 + $0x5]]
    %v80 = vstv %s79
    %v81 = vmul.f32 %v43, %v80
    %v83 = vrot.slane %v81, 5
    %v85 = vadd.f32 %v78, %v83
    %s86 = sld [smem:[#allocation7 + $0x6]]
    %v87 = vstv %s86
    %v88 = vmul.f32 %v43, %v87
    %v90 = vrot.slane %v88, 6
    %v92 = vadd.f32 %v85, %v90
    %s93 = sld [smem:[#allocation7 + $0x7]]
    %v94 = vstv %s93
    %v95 = vmul.f32 %v43, %v94
    %v97 = vrot.slane %v95, 7
    %v99 = vadd.f32 %v92, %v97
    %s100 = sld [smem:[#allocation7 + $0x8]]
    %v101 = vstv %s100
    %v102 = vmul.f32 %v44, %v101
    %v103 = vadd.f32 %v99, %v102
    %s104 = sld [smem:[#allocation7 + $0x9]]
    %v105 = vstv %s104
    %v106 = vmul.f32 %v44, %v105
    %v108 = vrot.slane %v106, 1
    %v110 = vadd.f32 %v103, %v108
    %111 = vst [vmem:[#allocation8] sm:$0x1] %v110
    // Predicated region
    $region22: #{tpu_custom_call.1} parent=1 // pred_check
      _
    $region23: #{tpu_custom_call.1} parent=1 // pred_check_branch
      %113 = sbr.rel (0) target = $region25
    $region24: #{tpu_custom_call.1} parent=1 // pred_region
      %s115 = ssub.s32 16, 16
      %116 = vsyncadd [#allocation5], %s115
      %s118 = sshll.u32 [#allocation8], 4
      %s119 = int_to_ptr.vmem [resolvable:$true] %s118
      %121 = dma.vmem_to_hbm [thread:$0]  %s119, 16, %s3, [#allocation5]
    $region25: #{tpu_custom_call.1} parent=1 // pred_fallthru
      _
    // Predicated region
    $region26: #{tpu_custom_call.1} parent=1 // pred_check
      _
    $region27: #{tpu_custom_call.1} parent=1 // pred_check_branch
      %123 = sbr.rel (0) target = $region29
    $region28: #{tpu_custom_call.1} parent=1 // pred_region
      %124 = dma.done [#allocation5], 16
    $region29: #{tpu_custom_call.1} parent=1 // pred_fallthru
      _
    %125 = vsyncpa [#allocation4], 1
    %126 = vsyncpa [#allocation5], 1
    %127 = vsyncpa [#allocation6], 1

</llo_original>
